<compile_context>
chip_gen: v6e
topology: v6e:2x2x1
jax: 0.10.0
libtpu: 0.0.40
codegen_flags: <defaults>
</compile_context>

<pallas_src>
import jax
import jax.numpy as jnp
from jax.experimental import pallas as pl
from jax.experimental.pallas import tpu as pltpu


def linear_attention_kernel(z_ref, w1bd_ref, b1_ref, w2_ref, o_ref):
    # z_ref   : (G, TN, D)   -- natural (graph, token, feature) layout
    # w1bd_ref: (G*H, G*D)   -- block-diagonal stacking of the G projections
    # b1_ref  : (G, H), w2_ref: (G, H)
    # o_ref   : (TN, D)
    G, H = b1_ref.shape
    TN = z_ref.shape[1]
    D = z_ref.shape[2]

    z = z_ref[...]                                   # native dtype (f32/bf16)
    # Tokens onto the lane axis (XLU transpose; XLU is otherwise idle here).
    zt = jnp.transpose(z, (0, 2, 1))                 # (G, D, TN)

    # Single well-filled MXU matmul: (G*H, G*D) @ (G*D, TN) -> (G*H, TN).
    # The (G, D, TN) -> (G*D, TN) collapse is layout-preserving (D % 8 == 0).
    z_flat = zt.reshape(G * D, TN)
    h = jnp.dot(w1bd_ref[...], z_flat,
                preferred_element_type=jnp.float32)  # (G*H, TN), f32 acc
    h = h.reshape(G, H, TN)

    b1 = b1_ref[...].astype(jnp.float32)             # (G, H)
    w2 = w2_ref[...].astype(jnp.float32)             # (G, H)
    h = jnp.tanh(h + b1[:, :, None])                 # EUP tanh, f32

    # Second linear (hidden -> 1): reduce over the H (sublane) axis.
    s = jnp.sum(w2[:, :, None] * h, axis=1)          # (G, TN), f32

    # Softmax across the graph axis (dim 0 in PyTorch), f32.
    m = jnp.max(s, axis=0, keepdims=True)
    e = jnp.exp(s - m)
    denom = jnp.sum(e, axis=0, keepdims=True)
    beta = e * pl.reciprocal(denom, approx=True)     # EUP reciprocal (free slot)

    # Weighted sum over graphs, then back to (TN, D) for the store.
    out_t = jnp.sum(beta[:, None, :] * zt, axis=0)   # (D, TN), f32
    o_ref[...] = jnp.transpose(out_t, (1, 0)).astype(o_ref.dtype)


def _pick_tile_n(N):
    # Single block unless N is large: each grid step costs ~0.35us of pipeline
    # overhead (pure loss on the single-TC v5e/v6e, and not worth sharding a
    # ~1us kernel across v7x's 2 TCs).  Tile only when each tile can carry
    # >= 1024 tokens; cap at 2048 (VMEM has 10x+ headroom at that size).
    if N % 128 != 0:
        return N                      # ragged N: one unpadded block
    for cand in (2048, 1024):
        if N % cand == 0 and N // cand >= 2:
            return cand
    return N


def linear_attention(z, w1, b1, w2, *, tile_n=None):
    """z: (G, N, D), w1: (G, H, D), b1: (G, H), w2: (G, H) -> (N, D)."""
    G, N, D = z.shape
    H = w1.shape[1]
    if tile_n is None:
        tile_n = _pick_tile_n(N)
    assert N % tile_n == 0, "N must be a multiple of tile_n"

    # Block-diagonal stacking of the per-graph projections (weights-only,
    # tiny): one (G*H, G*D) matmul fills the MXU far better than G separate
    # 32x32 matmuls.
    eye = jnp.eye(G, dtype=w1.dtype)
    w1_bd = jnp.einsum('ghd,gk->ghkd', w1, eye).reshape(G * H, G * D)

    out = pl.pallas_call(
        linear_attention_kernel,
        out_shape=jax.ShapeDtypeStruct((N, D), z.dtype),
        grid_spec=pltpu.PrefetchScalarGridSpec(
            num_scalar_prefetch=0,
            grid=(N // tile_n,),
            in_specs=[
                pl.BlockSpec((G, tile_n, D), lambda i: (0, i, 0)),      # z tile
                pl.BlockSpec((G * H, G * D), lambda i: (0, 0)),         # W1 (resident)
                pl.BlockSpec((G, H), lambda i: (0, 0)),                 # b1 (resident)
                pl.BlockSpec((G, H), lambda i: (0, 0)),                 # w2 (resident)
            ],
            out_specs=pl.BlockSpec((tile_n, D), lambda i: (i, 0)),
        ),
        compiler_params=pltpu.CompilerParams(
            dimension_semantics=("parallel",)),
    )(z, w1_bd, b1, w2)

    return out                                       # (N, D), no wrapper transpose


def linear_attention_ref(z, w1, b1, w2):
    h = jnp.tanh(jnp.einsum('gnd,ghd->gnh', z, w1) + b1[:, None, :])
    s = jnp.einsum('gnh,gh->gn', h, w2)
    beta = jax.nn.softmax(s, axis=0)
    return jnp.sum(beta[:, :, None] * z, axis=0)


if __name__ == "__main__":
    # Small shapes consistent with the module: graph_num=3, N=256 nodes,
    # in_size=32, hidden_size=32.  _pick_tile_n(256) -> single block,
    # single grid step (no per-step overhead, no wrapper relayout ops).
    G, N, D, H = 3, 256, 32, 32

    key = jax.random.PRNGKey(0)
    kz, kw1, kb1, kw2 = jax.random.split(key, 4)

    z = jax.random.normal(kz, (G, N, D), dtype=jnp.float32)

    # Deterministic parameter init mimicking nn.Linear defaults
    # (uniform +/- 1/sqrt(fan_in)).
    lim1 = 1.0 / jnp.sqrt(jnp.float32(D))
    lim2 = 1.0 / jnp.sqrt(jnp.float32(H))
    w1 = jax.random.uniform(kw1, (G, H, D), jnp.float32, -lim1, lim1)
    b1 = jax.random.uniform(kb1, (G, H), jnp.float32, -lim1, lim1)
    w2 = jax.random.uniform(kw2, (G, H), jnp.float32, -lim2, lim2)

    out = linear_attention(z, w1, b1, w2)
    out = jax.block_until_ready(out)

    ref = linear_attention_ref(z, w1, b1, w2)
    assert out.shape == (N, D)
    # Tolerance accounts for the approx-reciprocal softmax normalization
    # (relative error ~1e-4; beta sums over only G=3 terms).
    assert jnp.allclose(out, ref, atol=5e-3, rtol=5e-3), "mismatch vs reference"

    print("KERNEL_OK")
</pallas_src>

<mosaic_0001>
module attributes {stable_mosaic.version = 11 : i64} {
  func.func @linear_attention_kernel(%arg0: i32, %arg1: memref<3x256x32xf32, #tpu.memory_space<vmem>>, %arg2: memref<96x96xf32, #tpu.memory_space<vmem>>, %arg3: memref<3x32xf32, #tpu.memory_space<vmem>>, %arg4: memref<3x32xf32, #tpu.memory_space<vmem>>, %arg5: memref<256x32xf32, #tpu.memory_space<vmem>>) attributes {dimension_semantics = [#tpu.dimension_semantics<parallel>], iteration_bounds = array<i64: 1>, scalar_prefetch = 0 : i64, scratch_operands = 0 : i64, tpu.core_type = #tpu.core_type<tc>, window_params = [{transform_indices = @transform_0, window_bounds = array<i64: 3, 256, 32>}, {pipeline_mode = #tpu.pipeline_mode<synchronous>, transform_indices = @transform_1, window_bounds = array<i64: 96, 96>}, {pipeline_mode = #tpu.pipeline_mode<synchronous>, transform_indices = @transform_2, window_bounds = array<i64: 3, 32>}, {pipeline_mode = #tpu.pipeline_mode<synchronous>, transform_indices = @transform_3, window_bounds = array<i64: 3, 32>}, {transform_indices = @transform_4, window_bounds = array<i64: 256, 32>}]} {
    %c0 = arith.constant 0 : index
    %c0_0 = arith.constant 0 : index
    %c0_1 = arith.constant 0 : index
    %0 = vector.load %arg1[%c0, %c0_0, %c0_1] : memref<3x256x32xf32, #tpu.memory_space<vmem>>, vector<3x256x32xf32>
    %1 = tpu.transpose %0, [0, 2, 1] : vector<3x256x32xf32> -> vector<3x32x256xf32>
    %2 = vector.shape_cast %1 : vector<3x32x256xf32> to vector<96x256xf32>
    %c0_2 = arith.constant 0 : index
    %c0_3 = arith.constant 0 : index
    %3 = vector.load %arg2[%c0_2, %c0_3] : memref<96x96xf32, #tpu.memory_space<vmem>>, vector<96x96xf32>
    %cst = arith.constant dense<0.000000e+00> : vector<96x256xf32>
    %4 = tpu.matmul %3, %2, %cst {dimension_numbers = #tpu.dot_dimension_numbers<[1], [0], [0], [1], [0, 0, 1, 1], [], []>} : vector<96x96xf32>, vector<96x256xf32>, vector<96x256xf32> -> vector<96x256xf32>
    %5 = vector.shape_cast %4 : vector<96x256xf32> to vector<3x32x256xf32>
    %c0_4 = arith.constant 0 : index
    %c0_5 = arith.constant 0 : index
    %6 = vector.load %arg3[%c0_4, %c0_5] : memref<3x32xf32, #tpu.memory_space<vmem>>, vector<3x32xf32>
    %c0_6 = arith.constant 0 : index
    %c0_7 = arith.constant 0 : index
    %7 = vector.load %arg4[%c0_6, %c0_7] : memref<3x32xf32, #tpu.memory_space<vmem>>, vector<3x32xf32>
    %8 = vector.shape_cast %6 : vector<3x32xf32> to vector<3x32x1xf32>
    %9 = vector.broadcast %8 : vector<3x32x1xf32> to vector<3x32x256xf32>
    %10 = arith.addf %5, %9 : vector<3x32x256xf32>
    %11 = math.tanh %10 : vector<3x32x256xf32>
    %12 = vector.shape_cast %7 : vector<3x32xf32> to vector<3x32x1xf32>
    %13 = vector.broadcast %12 : vector<3x32x1xf32> to vector<3x32x256xf32>
    %14 = arith.mulf %13, %11 : vector<3x32x256xf32>
    %cst_8 = arith.constant dense<0.000000e+00> : vector<3x256xf32>
    %15 = vector.multi_reduction <add>, %14, %cst_8 [1] : vector<3x32x256xf32> to vector<3x256xf32>
    %cst_9 = arith.constant dense<0xFF800000> : vector<256xf32>
    %16 = vector.multi_reduction <maximumf>, %15, %cst_9 [0] : vector<3x256xf32> to vector<256xf32>
    %17 = vector.shape_cast %16 : vector<256xf32> to vector<1x256xf32>
    %18 = vector.broadcast %17 : vector<1x256xf32> to vector<3x256xf32>
    %19 = arith.subf %15, %18 : vector<3x256xf32>
    %20 = math.exp %19 : vector<3x256xf32>
    %cst_10 = arith.constant dense<0.000000e+00> : vector<256xf32>
    %21 = vector.multi_reduction <add>, %20, %cst_10 [0] : vector<3x256xf32> to vector<256xf32>
    %22 = vector.shape_cast %21 : vector<256xf32> to vector<1x256xf32>
    %23 = tpu.reciprocal %22 {approx = true} : vector<1x256xf32> -> vector<1x256xf32>
    %24 = vector.broadcast %23 : vector<1x256xf32> to vector<3x256xf32>
    %25 = arith.mulf %20, %24 : vector<3x256xf32>
    %26 = vector.shape_cast %25 : vector<3x256xf32> to vector<3x1x256xf32>
    %27 = vector.broadcast %26 : vector<3x1x256xf32> to vector<3x32x256xf32>
    %28 = arith.mulf %27, %1 : vector<3x32x256xf32>
    %cst_11 = arith.constant dense<0.000000e+00> : vector<32x256xf32>
    %29 = vector.multi_reduction <add>, %28, %cst_11 [0] : vector<3x32x256xf32> to vector<32x256xf32>
    %30 = tpu.transpose %29, [1, 0] : vector<32x256xf32> -> vector<256x32xf32>
    %c0_12 = arith.constant 0 : index
    %c0_13 = arith.constant 0 : index
    %31 = vector.load %arg5[%c0_12, %c0_13] : memref<256x32xf32, #tpu.memory_space<vmem>>, vector<256x32xf32>
    tpu.vector_store %arg5[%c0_12, %c0_13], %30 {strides = array<i32>} : memref<256x32xf32, #tpu.memory_space<vmem>>, vector<256x32xf32>,
    return
  }
  func.func @transform_0(%arg0: i32) -> (i32, i32, i32) {
    %c0_i32 = arith.constant 0 : i32
    %c0_i32_0 = arith.constant 0 : i32
    %c0_i32_1 = arith.constant 0 : i32
    return %c0_i32, %arg0, %c0_i32_0 : i32, i32, i32
  }
  func.func @transform_1(%arg0: i32) -> (i32, i32) {
    %c0_i32 = arith.constant 0 : i32
    %c0_i32_0 = arith.constant 0 : i32
    %c0_i32_1 = arith.constant 0 : i32
    return %c0_i32, %c0_i32_0 : i32, i32
  }
  func.func @transform_2(%arg0: i32) -> (i32, i32) {
    %c0_i32 = arith.constant 0 : i32
    %c0_i32_0 = arith.constant 0 : i32
    %c0_i32_1 = arith.constant 0 : i32
    return %c0_i32, %c0_i32_0 : i32, i32
  }
  func.func @transform_3(%arg0: i32) -> (i32, i32) {
    %c0_i32 = arith.constant 0 : i32
    %c0_i32_0 = arith.constant 0 : i32
    %c0_i32_1 = arith.constant 0 : i32
    return %c0_i32, %c0_i32_0 : i32, i32
  }
  func.func @transform_4(%arg0: i32) -> (i32, i32) {
    %c0_i32 = arith.constant 0 : i32
    %c0_i32_0 = arith.constant 0 : i32
    return %arg0, %c0_i32 : i32, i32
  }
}

</mosaic_0001>

<llo_original>
// kernel: tpu_custom_call.1
$region0: #{tpu_custom_call.1}
  #allocation0 [shape = 'u32[]', space=smem, size = 0x4, offset = 0x4, fixed_abs, tag = 'smem constant byte address 0x4 - core index']
  #allocation1 [shape = 'u32[144,128]{1,0:T(1,128)}', space=vmem, size = 0x12000, scoped, tag = 'internal scratch']
  %s0 = inlined_call_operand.vmem [shape: f32[3,256,32], index: 0, kind: input, shape index: {}]
  %s1 = inlined_call_operand.vmem [shape: f32[96,96], index: 1, kind: input, shape index: {}]
  %s2 = inlined_call_operand.vmem [shape: f32[3,32], index: 2, kind: input, shape index: {}]
  %s3 = inlined_call_operand.vmem [shape: f32[3,32], index: 3, kind: input, shape index: {}]
  %s4 = inlined_call_operand.vmem [shape: f32[256,32], index: 4, kind: output, shape index: {}]
  %s5 = sld [smem:[#allocation0]]
  $region26: #{tpu_custom_call.1} parent=0
    _
  %s7 = ssub.s32 1, %s5
  %s8 = scalar_select 0, %s7, %s5
  // Predicated region
  $region2: #{tpu_custom_call.1} parent=0 // pred_check
    _
  $region3: #{tpu_custom_call.1} parent=0 // pred_check_branch
    %10 = sbr.rel (0) target = $region5
  $region4: #{tpu_custom_call.1} parent=0 // pred_region
    _
  $region5: #{tpu_custom_call.1} parent=0 // pred_fallthru
    _
  // Predicated region
  $region6: #{tpu_custom_call.1} parent=0 // pred_check
    _
  $region7: #{tpu_custom_call.1} parent=0 // pred_check_branch
    %12 = sbr.rel (0) target = $region9
  $region8: #{tpu_custom_call.1} parent=0 // pred_region
    _
  $region9: #{tpu_custom_call.1} parent=0 // pred_fallthru
    _
  // Predicated region
  $region10: #{tpu_custom_call.1} parent=0 // pred_check
    _
  $region11: #{tpu_custom_call.1} parent=0 // pred_check_branch
    %14 = sbr.rel (0) target = $region13
  $region12: #{tpu_custom_call.1} parent=0 // pred_region
    _
  $region13: #{tpu_custom_call.1} parent=0 // pred_fallthru
    _
  // Predicated region
  $region14: #{tpu_custom_call.1} parent=0 // pred_check
    _
  $region15: #{tpu_custom_call.1} parent=0 // pred_check_branch
    %16 = sbr.rel (0) target = $region17
  $region16: #{tpu_custom_call.1} parent=0 // pred_region
    _
  $region17: #{tpu_custom_call.1} parent=0 // pred_fallthru
    _
  %v17 = vld [vmem:[%s0] sm:$0xff]
  %v18 = vld [vmem:[%s0 + $0x8] sm:$0xff]
  %v19 = vld [vmem:[%s0 + $0x10] sm:$0xff]
  %v20 = vld [vmem:[%s0 + $0x18] sm:$0xff]
  %v21 = vld [vmem:[%s0 + $0x20] sm:$0xff]
  %v22 = vld [vmem:[%s0 + $0x28] sm:$0xff]
  %v23 = vld [vmem:[%s0 + $0x30] sm:$0xff]
  %v24 = vld [vmem:[%s0 + $0x38] sm:$0xff]
  %v25 = vld [vmem:[%s0 + $0x40] sm:$0xff]
  %v26 = vld [vmem:[%s0 + $0x48] sm:$0xff]
  %v27 = vld [vmem:[%s0 + $0x50] sm:$0xff]
  %v28 = vld [vmem:[%s0 + $0x58] sm:$0xff]
  %v29 = vld [vmem:[%s0 + $0x60] sm:$0xff]
  %v30 = vld [vmem:[%s0 + $0x68] sm:$0xff]
  %v31 = vld [vmem:[%s0 + $0x70] sm:$0xff]
  %v32 = vld [vmem:[%s0 + $0x78] sm:$0xff]
  %v33 = vld [vmem:[%s0 + $0x80] sm:$0xff]
  %v34 = vld [vmem:[%s0 + $0x88] sm:$0xff]
  %v35 = vld [vmem:[%s0 + $0x90] sm:$0xff]
  %v36 = vld [vmem:[%s0 + $0x98] sm:$0xff]
  %v37 = vld [vmem:[%s0 + $0xa0] sm:$0xff]
  %v38 = vld [vmem:[%s0 + $0xa8] sm:$0xff]
  %v39 = vld [vmem:[%s0 + $0xb0] sm:$0xff]
  %v40 = vld [vmem:[%s0 + $0xb8] sm:$0xff]
  %v41 = vld [vmem:[%s0 + $0xc0] sm:$0xff]
  %v42 = vld [vmem:[%s0 + $0xc8] sm:$0xff]
  %v43 = vld [vmem:[%s0 + $0xd0] sm:$0xff]
  %v44 = vld [vmem:[%s0 + $0xd8] sm:$0xff]
  %v45 = vld [vmem:[%s0 + $0xe0] sm:$0xff]
  %v46 = vld [vmem:[%s0 + $0xe8] sm:$0xff]
  %v47 = vld [vmem:[%s0 + $0xf0] sm:$0xff]
  %v48 = vld [vmem:[%s0 + $0xf8] sm:$0xff]
  %v49 = vld [vmem:[%s0 + $0x100] sm:$0xff]
  %v50 = vld [vmem:[%s0 + $0x108] sm:$0xff]
  %v51 = vld [vmem:[%s0 + $0x110] sm:$0xff]
  %v52 = vld [vmem:[%s0 + $0x118] sm:$0xff]
  %v53 = vld [vmem:[%s0 + $0x120] sm:$0xff]
  %v54 = vld [vmem:[%s0 + $0x128] sm:$0xff]
  %v55 = vld [vmem:[%s0 + $0x130] sm:$0xff]
  %v56 = vld [vmem:[%s0 + $0x138] sm:$0xff]
  %v57 = vld [vmem:[%s0 + $0x140] sm:$0xff]
  %v58 = vld [vmem:[%s0 + $0x148] sm:$0xff]
  %v59 = vld [vmem:[%s0 + $0x150] sm:$0xff]
  %v60 = vld [vmem:[%s0 + $0x158] sm:$0xff]
  %v61 = vld [vmem:[%s0 + $0x160] sm:$0xff]
  %v62 = vld [vmem:[%s0 + $0x168] sm:$0xff]
  %v63 = vld [vmem:[%s0 + $0x170] sm:$0xff]
  %v64 = vld [vmem:[%s0 + $0x178] sm:$0xff]
  %v65 = vld [vmem:[%s0 + $0x180] sm:$0xff]
  %v66 = vld [vmem:[%s0 + $0x188] sm:$0xff]
  %v67 = vld [vmem:[%s0 + $0x190] sm:$0xff]
  %v68 = vld [vmem:[%s0 + $0x198] sm:$0xff]
  %v69 = vld [vmem:[%s0 + $0x1a0] sm:$0xff]
  %v70 = vld [vmem:[%s0 + $0x1a8] sm:$0xff]
  %v71 = vld [vmem:[%s0 + $0x1b0] sm:$0xff]
  %v72 = vld [vmem:[%s0 + $0x1b8] sm:$0xff]
  %v73 = vld [vmem:[%s0 + $0x1c0] sm:$0xff]
  %v74 = vld [vmem:[%s0 + $0x1c8] sm:$0xff]
  %v75 = vld [vmem:[%s0 + $0x1d0] sm:$0xff]
  %v76 = vld [vmem:[%s0 + $0x1d8] sm:$0xff]
  %v77 = vld [vmem:[%s0 + $0x1e0] sm:$0xff]
  %v78 = vld [vmem:[%s0 + $0x1e8] sm:$0xff]
  %v79 = vld [vmem:[%s0 + $0x1f0] sm:$0xff]
  %v80 = vld [vmem:[%s0 + $0x1f8] sm:$0xff]
  %v81 = vld [vmem:[%s0 + $0x200] sm:$0xff]
  %v82 = vld [vmem:[%s0 + $0x208] sm:$0xff]
  %v83 = vld [vmem:[%s0 + $0x210] sm:$0xff]
  %v84 = vld [vmem:[%s0 + $0x218] sm:$0xff]
  %v85 = vld [vmem:[%s0 + $0x220] sm:$0xff]
  %v86 = vld [vmem:[%s0 + $0x228] sm:$0xff]
  %v87 = vld [vmem:[%s0 + $0x230] sm:$0xff]
  %v88 = vld [vmem:[%s0 + $0x238] sm:$0xff]
  %v89 = vld [vmem:[%s0 + $0x240] sm:$0xff]
  %v90 = vld [vmem:[%s0 + $0x248] sm:$0xff]
  %v91 = vld [vmem:[%s0 + $0x250] sm:$0xff]
  %v92 = vld [vmem:[%s0 + $0x258] sm:$0xff]
  %v93 = vld [vmem:[%s0 + $0x260] sm:$0xff]
  %v94 = vld [vmem:[%s0 + $0x268] sm:$0xff]
  %v95 = vld [vmem:[%s0 + $0x270] sm:$0xff]
  %v96 = vld [vmem:[%s0 + $0x278] sm:$0xff]
  %v97 = vld [vmem:[%s0 + $0x280] sm:$0xff]
  %v98 = vld [vmem:[%s0 + $0x288] sm:$0xff]
  %v99 = vld [vmem:[%s0 + $0x290] sm:$0xff]
  %v100 = vld [vmem:[%s0 + $0x298] sm:$0xff]
  %v101 = vld [vmem:[%s0 + $0x2a0] sm:$0xff]
  %v102 = vld [vmem:[%s0 + $0x2a8] sm:$0xff]
  %v103 = vld [vmem:[%s0 + $0x2b0] sm:$0xff]
  %v104 = vld [vmem:[%s0 + $0x2b8] sm:$0xff]
  %v105 = vld [vmem:[%s0 + $0x2c0] sm:$0xff]
  %v106 = vld [vmem:[%s0 + $0x2c8] sm:$0xff]
  %v107 = vld [vmem:[%s0 + $0x2d0] sm:$0xff]
  %v108 = vld [vmem:[%s0 + $0x2d8] sm:$0xff]
  %v109 = vld [vmem:[%s0 + $0x2e0] sm:$0xff]
  %v110 = vld [vmem:[%s0 + $0x2e8] sm:$0xff]
  %v111 = vld [vmem:[%s0 + $0x2f0] sm:$0xff]
  %v112 = vld [vmem:[%s0 + $0x2f8] sm:$0xff]
  %113 = vxpose.xlu0.b32.start [1/16] %v17, 128
  %114 = vxpose.xlu0.b32.cont [2/16] %v18, 128
  %115 = vxpose.xlu0.b32.cont [3/16] %v19, 128
  %116 = vxpose.xlu0.b32.cont [4/16] %v20, 128
  %117 = vxpose.xlu0.b32.cont [5/16] %v21, 128
  %118 = vxpose.xlu0.b32.cont [6/16] %v22, 128
  %119 = vxpose.xlu0.b32.cont [7/16] %v23, 128
  %120 = vxpose.xlu0.b32.cont [8/16] %v24, 128
  %121 = vxpose.xlu0.b32.cont [9/16] %v25, 128
  %122 = vxpose.xlu0.b32.cont [10/16] %v26, 128
  %123 = vxpose.xlu0.b32.cont [11/16] %v27, 128
  %124 = vxpose.xlu0.b32.cont [12/16] %v28, 128
  %125 = vxpose.xlu0.b32.cont [13/16] %v29, 128
  %126 = vxpose.xlu0.b32.cont [14/16] %v30, 128
  %127 = vxpose.xlu0.b32.cont [15/16] %v31, 128
  %128 = vxpose.xlu0.b32.end [16/16] %v32, 128
  %v129 = vpop.trf.xlu0
  %v130 = vpop.trf.xlu0
  %v131 = vpop.trf.xlu0
  %v132 = vpop.trf.xlu0
  %v133 = vpop.trf.xlu0
  %v134 = vpop.trf.xlu0
  %v135 = vpop.trf.xlu0
  %v136 = vpop.trf.xlu0
  %v137 = vpop.trf.xlu0
  %v138 = vpop.trf.xlu0
  %v139 = vpop.trf.xlu0
  %v140 = vpop.trf.xlu0
  %v141 = vpop.trf.xlu0
  %v142 = vpop.trf.xlu0
  %v143 = vpop.trf.xlu0
  %v144 = vpop.trf.xlu0
  %145 = vxpose.xlu0.b32.start [1/16] %v33, 128
  %146 = vxpose.xlu0.b32.cont [2/16] %v34, 128
  %147 = vxpose.xlu0.b32.cont [3/16] %v35, 128
  %148 = vxpose.xlu0.b32.cont [4/16] %v36, 128
  %149 = vxpose.xlu0.b32.cont [5/16] %v37, 128
  %150 = vxpose.xlu0.b32.cont [6/16] %v38, 128
  %151 = vxpose.xlu0.b32.cont [7/16] %v39, 128
  %152 = vxpose.xlu0.b32.cont [8/16] %v40, 128
  %153 = vxpose.xlu0.b32.cont [9/16] %v41, 128
  %154 = vxpose.xlu0.b32.cont [10/16] %v42, 128
  %155 = vxpose.xlu0.b32.cont [11/16] %v43, 128
  %156 = vxpose.xlu0.b32.cont [12/16] %v44, 128
  %157 = vxpose.xlu0.b32.cont [13/16] %v45, 128
  %158 = vxpose.xlu0.b32.cont [14/16] %v46, 128
  %159 = vxpose.xlu0.b32.cont [15/16] %v47, 128
  %160 = vxpose.xlu0.b32.end [16/16] %v48, 128
  %v161 = vpop.trf.xlu0
  %v162 = vpop.trf.xlu0
  %v163 = vpop.trf.xlu0
  %v164 = vpop.trf.xlu0
  %v165 = vpop.trf.xlu0
  %v166 = vpop.trf.xlu0
  %v167 = vpop.trf.xlu0
  %v168 = vpop.trf.xlu0
  %v169 = vpop.trf.xlu0
  %v170 = vpop.trf.xlu0
  %v171 = vpop.trf.xlu0
  %v172 = vpop.trf.xlu0
  %v173 = vpop.trf.xlu0
  %v174 = vpop.trf.xlu0
  %v175 = vpop.trf.xlu0
  %v176 = vpop.trf.xlu0
  %177 = vxpose.xlu0.b32.start [1/16] %v49, 128
  %178 = vxpose.xlu0.b32.cont [2/16] %v50, 128
  %179 = vxpose.xlu0.b32.cont [3/16] %v51, 128
  %180 = vxpose.xlu0.b32.cont [4/16] %v52, 128
  %181 = vxpose.xlu0.b32.cont [5/16] %v53, 128
  %182 = vxpose.xlu0.b32.cont [6/16] %v54, 128
  %183 = vxpose.xlu0.b32.cont [7/16] %v55, 128
  %184 = vxpose.xlu0.b32.cont [8/16] %v56, 128
  %185 = vxpose.xlu0.b32.cont [9/16] %v57, 128
  %186 = vxpose.xlu0.b32.cont [10/16] %v58, 128
  %187 = vxpose.xlu0.b32.cont [11/16] %v59, 128
  %188 = vxpose.xlu0.b32.cont [12/16] %v60, 128
  %189 = vxpose.xlu0.b32.cont [13/16] %v61, 128
  %190 = vxpose.xlu0.b32.cont [14/16] %v62, 128
  %191 = vxpose.xlu0.b32.cont [15/16] %v63, 128
  %192 = vxpose.xlu0.b32.end [16/16] %v64, 128
  %v193 = vpop.trf.xlu0
  %v194 = vpop.trf.xlu0
  %v195 = vpop.trf.xlu0
  %v196 = vpop.trf.xlu0
  %v197 = vpop.trf.xlu0
  %v198 = vpop.trf.xlu0
  %v199 = vpop.trf.xlu0
  %v200 = vpop.trf.xlu0
  %v201 = vpop.trf.xlu0
  %v202 = vpop.trf.xlu0
  %v203 = vpop.trf.xlu0
  %v204 = vpop.trf.xlu0
  %v205 = vpop.trf.xlu0
  %v206 = vpop.trf.xlu0
  %v207 = vpop.trf.xlu0
  %v208 = vpop.trf.xlu0
  %209 = vxpose.xlu0.b32.start [1/16] %v65, 128
  %210 = vxpose.xlu0.b32.cont [2/16] %v66, 128
  %211 = vxpose.xlu0.b32.cont [3/16] %v67, 128
  %212 = vxpose.xlu0.b32.cont [4/16] %v68, 128
  %213 = vxpose.xlu0.b32.cont [5/16] %v69, 128
  %214 = vxpose.xlu0.b32.cont [6/16] %v70, 128
  %215 = vxpose.xlu0.b32.cont [7/16] %v71, 128
  %216 = vxpose.xlu0.b32.cont [8/16] %v72, 128
  %217 = vxpose.xlu0.b32.cont [9/16] %v73, 128
  %218 = vxpose.xlu0.b32.cont [10/16] %v74, 128
  %219 = vxpose.xlu0.b32.cont [11/16] %v75, 128
  %220 = vxpose.xlu0.b32.cont [12/16] %v76, 128
  %221 = vxpose.xlu0.b32.cont [13/16] %v77, 128
  %222 = vxpose.xlu0.b32.cont [14/16] %v78, 128
  %223 = vxpose.xlu0.b32.cont [15/16] %v79, 128
  %224 = vxpose.xlu0.b32.end [16/16] %v80, 128
  %v225 = vpop.trf.xlu0
  %v226 = vpop.trf.xlu0
  %v227 = vpop.trf.xlu0
  %v228 = vpop.trf.xlu0
  %v229 = vpop.trf.xlu0
  %v230 = vpop.trf.xlu0
  %v231 = vpop.trf.xlu0
  %v232 = vpop.trf.xlu0
  %v233 = vpop.trf.xlu0
  %v234 = vpop.trf.xlu0
  %v235 = vpop.trf.xlu0
  %v236 = vpop.trf.xlu0
  %v237 = vpop.trf.xlu0
  %v238 = vpop.trf.xlu0
  %v239 = vpop.trf.xlu0
  %v240 = vpop.trf.xlu0
  %241 = vxpose.xlu0.b32.start [1/16] %v81, 128
  %242 = vxpose.xlu0.b32.cont [2/16] %v82, 128
  %243 = vxpose.xlu0.b32.cont [3/16] %v83, 128
  %244 = vxpose.xlu0.b32.cont [4/16] %v84, 128
  %245 = vxpose.xlu0.b32.cont [5/16] %v85, 128
  %246 = vxpose.xlu0.b32.cont [6/16] %v86, 128
  %247 = vxpose.xlu0.b32.cont [7/16] %v87, 128
  %248 = vxpose.xlu0.b32.cont [8/16] %v88, 128
  %249 = vxpose.xlu0.b32.cont [9/16] %v89, 128
  %250 = vxpose.xlu0.b32.cont [10/16] %v90, 128
  %251 = vxpose.xlu0.b32.cont [11/16] %v91, 128
  %252 = vxpose.xlu0.b32.cont [12/16] %v92, 128
  %253 = vxpose.xlu0.b32.cont [13/16] %v93, 128
  %254 = vxpose.xlu0.b32.cont [14/16] %v94, 128
  %255 = vxpose.xlu0.b32.cont [15/16] %v95, 128
  %256 = vxpose.xlu0.b32.end [16/16] %v96, 128
  %v257 = vpop.trf.xlu0
  %v258 = vpop.trf.xlu0
  %v259 = vpop.trf.xlu0
  %v260 = vpop.trf.xlu0
  %v261 = vpop.trf.xlu0
  %v262 = vpop.trf.xlu0
  %v263 = vpop.trf.xlu0
  %v264 = vpop.trf.xlu0
  %v265 = vpop.trf.xlu0
  %v266 = vpop.trf.xlu0
  %v267 = vpop.trf.xlu0
  %v268 = vpop.trf.xlu0
  %v269 = vpop.trf.xlu0
  %v270 = vpop.trf.xlu0
  %v271 = vpop.trf.xlu0
  %v272 = vpop.trf.xlu0
  %273 = vxpose.xlu0.b32.start [1/16] %v97, 128
  %274 = vxpose.xlu0.b32.cont [2/16] %v98, 128
  %275 = vxpose.xlu0.b32.cont [3/16] %v99, 128
  %276 = vxpose.xlu0.b32.cont [4/16] %v100, 128
  %277 = vxpose.xlu0.b32.cont [5/16] %v101, 128
  %278 = vxpose.xlu0.b32.cont [6/16] %v102, 128
  %279 = vxpose.xlu0.b32.cont [7/16] %v103, 128
  %280 = vxpose.xlu0.b32.cont [8/16] %v104, 128
  %281 = vxpose.xlu0.b32.cont [9/16] %v105, 128
  %282 = vxpose.xlu0.b32.cont [10/16] %v106, 128
  %283 = vxpose.xlu0.b32.cont [11/16] %v107, 128
  %284 = vxpose.xlu0.b32.cont [12/16] %v108, 128
  %285 = vxpose.xlu0.b32.cont [13/16] %v109, 128
  %286 = vxpose.xlu0.b32.cont [14/16] %v110, 128
  %287 = vxpose.xlu0.b32.cont [15/16] %v111, 128
  %288 = vxpose.xlu0.b32.end [16/16] %v112, 128
  %v289 = vpop.trf.xlu0
  %v290 = vpop.trf.xlu0
  %v291 = vpop.trf.xlu0
  %v292 = vpop.trf.xlu0
  %v293 = vpop.trf.xlu0
  %v294 = vpop.trf.xlu0
  %v295 = vpop.trf.xlu0
  %v296 = vpop.trf.xlu0
  %v297 = vpop.trf.xlu0
  %v298 = vpop.trf.xlu0
  %v299 = vpop.trf.xlu0
  %v300 = vpop.trf.xlu0
  %v301 = vpop.trf.xlu0
  %v302 = vpop.trf.xlu0
  %v303 = vpop.trf.xlu0
  %v304 = vpop.trf.xlu0
  %v305 = vld [vmem:[%s1] sm:$0xff]
  %v306 = vld [vmem:[%s1 + $0x8] sm:$0xff]
  %v307 = vld [vmem:[%s1 + $0x10] sm:$0xff]
  %v308 = vld [vmem:[%s1 + $0x18] sm:$0xff]
  %v309 = vld [vmem:[%s1 + $0x20] sm:$0xff]
  %v310 = vld [vmem:[%s1 + $0x28] sm:$0xff]
  %v311 = vld [vmem:[%s1 + $0x30] sm:$0xff]
  %v312 = vld [vmem:[%s1 + $0x38] sm:$0xff]
  %v313 = vld [vmem:[%s1 + $0x40] sm:$0xff]
  %v314 = vld [vmem:[%s1 + $0x48] sm:$0xff]
  %v315 = vld [vmem:[%s1 + $0x50] sm:$0xff]
  %v316 = vld [vmem:[%s1 + $0x58] sm:$0xff]
  %vm317 = vcmask 785408
  %v319 = vsel %vm317, %v305, 0
  %v322 = vsel %vm317, %v306, 0
  %v325 = vsel %vm317, %v307, 0
  %v328 = vsel %vm317, %v308, 0
  %v331 = vsel %vm317, %v309, 0
  %v334 = vsel %vm317, %v310, 0
  %v337 = vsel %vm317, %v311, 0
  %v340 = vsel %vm317, %v312, 0
  %v343 = vsel %vm317, %v313, 0
  %v346 = vsel %vm317, %v314, 0
  %v349 = vsel %vm317, %v315, 0
  %v352 = vsel %vm317, %v316, 0
  %354 = vmatprep.subr.mxu0 0.0
  %355 = vmatpush1.msra.mxu0 0.0
  %356 = vmatprep.subr.mxu0 0.0
  %357 = vmatpush1.msra.mxu0 0.0
  %358 = vmatprep.subr.mxu0 0.0
  %359 = vmatpush1.msra.mxu0 0.0
  %360 = vmatprep.subr.mxu0 0.0
  %361 = vmatpush1.msra.mxu0 0.0
  %362 = vmatprep.subr.mxu0 %v292
  %363 = vmatpush1.msra.mxu0 %v260
  %364 = vmatprep.subr.mxu0 %v291
  %365 = vmatpush1.msra.mxu0 %v259
  %366 = vmatprep.subr.mxu0 %v290
  %367 = vmatpush1.msra.mxu0 %v258
  %368 = vmatprep.subr.mxu0 %v289
  %369 = vmatpush1.msra.mxu0 %v257
  %370 = vmatprep.subr.mxu0 %v228
  %371 = vmatpush1.msra.mxu0 %v196
  %372 = vmatprep.subr.mxu0 %v227
  %373 = vmatpush1.msra.mxu0 %v195
  %374 = vmatprep.subr.mxu0 %v226
  %375 = vmatpush1.msra.mxu0 %v194
  %376 = vmatprep.subr.mxu0 %v225
  %377 = vmatpush1.msra.mxu0 %v193
  %378 = vmatprep.subr.mxu0 %v164
  %379 = vmatpush1.msra.mxu0 %v132
  %380 = vmatprep.subr.mxu0 %v163
  %381 = vmatpush1.msra.mxu0 %v131
  %382 = vmatprep.subr.mxu0 %v162
  %383 = vmatpush1.msra.mxu0 %v130
  %384 = vmatprep.subr.mxu0 %v161
  %385 = vmatpush1.msra.mxu0 %v129
  %386 = vmatprep.subr.mxu0 0.0
  %387 = vmatpush2.msra.mxu0 0.0
  %388 = vmatprep.subr.mxu0 0.0
  %389 = vmatpush2.msra.mxu0 0.0
  %390 = vmatprep.subr.mxu0 0.0
  %391 = vmatpush2.msra.mxu0 0.0
  %392 = vmatprep.subr.mxu0 0.0
  %393 = vmatpush2.msra.mxu0 0.0
  %394 = vmatprep.subr.mxu0 0.0
  %395 = vmatpush2.msra.mxu0 0.0
  %396 = vmatprep.subr.mxu0 0.0
  %397 = vmatpush2.msra.mxu0 0.0
  %398 = vmatprep.subr.mxu0 0.0
  %399 = vmatpush2.msra.mxu0 0.0
  %400 = vmatprep.subr.mxu0 0.0
  %401 = vmatpush2.msra.mxu0 0.0
  %402 = vmatprep.subr.mxu0 0.0
  %403 = vmatpush2.msra.mxu0 0.0
  %404 = vmatprep.subr.mxu0 0.0
  %405 = vmatpush2.msra.mxu0 0.0
  %406 = vmatprep.subr.mxu0 0.0
  %407 = vmatpush2.msra.mxu0 0.0
  %408 = vmatprep.subr.mxu0 0.0
  %409 = vmatpush2.msra.mxu0 0.0
  %410 = vmatprep.subr.mxu0 0.0
  %411 = vmatpush2.msra.mxu0 0.0
  %412 = vmatprep.subr.mxu0 0.0
  %413 = vmatpush2.msra.mxu0 0.0
  %414 = vmatprep.subr.mxu0 0.0
  %415 = vmatpush2.msra.mxu0 0.0
  %416 = vmatprep.subr.mxu0 0.0
  %417 = vmatpush2.msra.mxu0 0.0
  %418 = vmatprep.mubr.f32.mxu0 0.0
  %419 = vmatmul.mubr.f32.gmra.mxu0 %v319
  %v420 = vpop.f32.mrf.mxu0
  %v421 = vadd.f32 0.0, %v420
  %v422 = vpop.f32.mrf.mxu0
  %v423 = vadd.f32 0.0, %v422
  %424 = vmatprep.mubr.f32.mxu0 0.0
  %425 = vmatmul.mubr.f32.gmra.mxu0 %v322
  %v426 = vpop.f32.mrf.mxu0
  %v427 = vadd.f32 0.0, %v426
  %v428 = vpop.f32.mrf.mxu0
  %v429 = vadd.f32 0.0, %v428
  %430 = vmatprep.mubr.f32.mxu0 0.0
  %431 = vmatmul.mubr.f32.gmra.mxu0 %v325
  %v432 = vpop.f32.mrf.mxu0
  %v433 = vadd.f32 0.0, %v432
  %v434 = vpop.f32.mrf.mxu0
  %v435 = vadd.f32 0.0, %v434
  %436 = vmatprep.mubr.f32.mxu0 0.0
  %437 = vmatmul.mubr.f32.gmra.mxu0 %v328
  %v438 = vpop.f32.mrf.mxu0
  %v439 = vadd.f32 0.0, %v438
  %v440 = vpop.f32.mrf.mxu0
  %v441 = vadd.f32 0.0, %v440
  %442 = vmatprep.mubr.f32.mxu0 0.0
  %443 = vmatmul.mubr.f32.gmra.mxu0 %v331
  %v444 = vpop.f32.mrf.mxu0
  %v445 = vadd.f32 0.0, %v444
  %v446 = vpop.f32.mrf.mxu0
  %v447 = vadd.f32 0.0, %v446
  %448 = vmatprep.mubr.f32.mxu0 0.0
  %449 = vmatmul.mubr.f32.gmra.mxu0 %v334
  %v450 = vpop.f32.mrf.mxu0
  %v451 = vadd.f32 0.0, %v450
  %v452 = vpop.f32.mrf.mxu0
  %v453 = vadd.f32 0.0, %v452
  %454 = vmatprep.mubr.f32.mxu0 0.0
  %455 = vmatmul.mubr.f32.gmra.mxu0 %v337
  %v456 = vpop.f32.mrf.mxu0
  %v457 = vadd.f32 0.0, %v456
  %v458 = vpop.f32.mrf.mxu0
  %v459 = vadd.f32 0.0, %v458
  %460 = vmatprep.mubr.f32.mxu0 0.0
  %461 = vmatmul.mubr.f32.gmra.mxu0 %v340
  %v462 = vpop.f32.mrf.mxu0
  %v463 = vadd.f32 0.0, %v462
  %v464 = vpop.f32.mrf.mxu0
  %v465 = vadd.f32 0.0, %v464
  %466 = vmatprep.mubr.f32.mxu0 0.0
  %467 = vmatmul.mubr.f32.gmra.mxu0 %v343
  %v468 = vpop.f32.mrf.mxu0
  %v469 = vadd.f32 0.0, %v468
  %v470 = vpop.f32.mrf.mxu0
  %v471 = vadd.f32 0.0, %v470
  %472 = vmatprep.mubr.f32.mxu0 0.0
  %473 = vmatmul.mubr.f32.gmra.mxu0 %v346
  %v474 = vpop.f32.mrf.mxu0
  %v475 = vadd.f32 0.0, %v474
  %v476 = vpop.f32.mrf.mxu0
  %v477 = vadd.f32 0.0, %v476
  %478 = vmatprep.mubr.f32.mxu0 0.0
  %479 = vmatmul.mubr.f32.gmra.mxu0 %v349
  %v480 = vpop.f32.mrf.mxu0
  %v481 = vadd.f32 0.0, %v480
  %v482 = vpop.f32.mrf.mxu0
  %v483 = vadd.f32 0.0, %v482
  %484 = vmatprep.mubr.f32.mxu0 0.0
  %485 = vmatmul.mubr.f32.gmra.mxu0 %v352
  %v486 = vpop.f32.mrf.mxu0
  %v487 = vadd.f32 0.0, %v486
  %v488 = vpop.f32.mrf.mxu0
  %v489 = vadd.f32 0.0, %v488
  %490 = vdwg.mxu0
  %v491 = vld [vmem:[%s2] sm:$0x7]
  %v492 = vld [vmem:[%s3] sm:$0x7]
  %v493 = vlaneseq
  %v494 = vshrl.u32 %v493, 7
  %v495 = vsub.s32 0, %v494
  %v496 = vrot.slane %v491, %v495
  %498 = vbcast.lane.b32.xlu0 %v496, 256
  %v499 = vpop.permute.xlu0 %498
  %s501 = sor.u32 256, 8
  %502 = vbcast.lane.b32.xlu0 %v496, %s501
  %v503 = vpop.permute.xlu0 %502
  %s505 = sor.u32 256, 16
  %506 = vbcast.lane.b32.xlu0 %v496, %s505
  %v507 = vpop.permute.xlu0 %506
  %s509 = sor.u32 256, 24
  %510 = vbcast.lane.b32.xlu0 %v496, %s509
  %v511 = vpop.permute.xlu0 %510
  %v512 = vlaneseq
  %v513 = vshrl.u32 %v512, 7
  %v514 = vsub.s32 1, %v513
  %v515 = vrot.slane %v491, %v514
  %517 = vbcast.lane.b32.xlu0 %v515, 256
  %v518 = vpop.permute.xlu0 %517
  %s520 = sor.u32 256, 8
  %521 = vbcast.lane.b32.xlu0 %v515, %s520
  %v522 = vpop.permute.xlu0 %521
  %s524 = sor.u32 256, 16
  %525 = vbcast.lane.b32.xlu0 %v515, %s524
  %v526 = vpop.permute.xlu0 %525
  %s528 = sor.u32 256, 24
  %529 = vbcast.lane.b32.xlu0 %v515, %s528
  %v530 = vpop.permute.xlu0 %529
  %v531 = vlaneseq
  %v532 = vshrl.u32 %v531, 7
  %v533 = vsub.s32 2, %v532
  %v534 = vrot.slane %v491, %v533
  %536 = vbcast.lane.b32.xlu0 %v534, 256
  %v537 = vpop.permute.xlu0 %536
  %s539 = sor.u32 256, 8
  %540 = vbcast.lane.b32.xlu0 %v534, %s539
  %v541 = vpop.permute.xlu0 %540
  %s543 = sor.u32 256, 16
  %544 = vbcast.lane.b32.xlu0 %v534, %s543
  %v545 = vpop.permute.xlu0 %544
  %s547 = sor.u32 256, 24
  %548 = vbcast.lane.b32.xlu0 %v534, %s547
  %v549 = vpop.permute.xlu0 %548
  %v550 = vadd.f32 %v421, %v499
  %v551 = vadd.f32 %v423, %v499
  %v552 = vadd.f32 %v427, %v503
  %v553 = vadd.f32 %v429, %v503
  %v554 = vadd.f32 %v433, %v507
  %v555 = vadd.f32 %v435, %v507
  %v556 = vadd.f32 %v439, %v511
  %v557 = vadd.f32 %v441, %v511
  %v558 = vadd.f32 %v445, %v518
  %v559 = vadd.f32 %v447, %v518
  %v560 = vadd.f32 %v451, %v522
  %v561 = vadd.f32 %v453, %v522
  %v562 = vadd.f32 %v457, %v526
  %v563 = vadd.f32 %v459, %v526
  %v564 = vadd.f32 %v463, %v530
  %v565 = vadd.f32 %v465, %v530
  %v566 = vadd.f32 %v469, %v537
  %v567 = vadd.f32 %v471, %v537
  %v568 = vadd.f32 %v475, %v541
  %v569 = vadd.f32 %v477, %v541
  %v570 = vadd.f32 %v481, %v545
  %v571 = vadd.f32 %v483, %v545
  %v572 = vadd.f32 %v487, %v549
  %v573 = vadd.f32 %v489, %v549
  %v574 = vtanh.pop %v550
  %v575 = vtanh.pop %v551
  %v576 = vtanh.pop %v552
  %v577 = vtanh.pop %v553
  %v578 = vtanh.pop %v554
  %v579 = vtanh.pop %v555
  %v580 = vtanh.pop %v556
  %v581 = vtanh.pop %v557
  %v582 = vtanh.pop %v558
  %v583 = vtanh.pop %v559
  %v584 = vtanh.pop %v560
  %v585 = vtanh.pop %v561
  %v586 = vtanh.pop %v562
  %v587 = vtanh.pop %v563
  %v588 = vtanh.pop %v564
  %v589 = vtanh.pop %v565
  %v590 = vtanh.pop %v566
  %v591 = vtanh.pop %v567
  %v592 = vtanh.pop %v568
  %v593 = vtanh.pop %v569
  %v594 = vtanh.pop %v570
  %v595 = vtanh.pop %v571
  %v596 = vtanh.pop %v572
  %v597 = vtanh.pop %v573
  %v598 = vlaneseq
  %v599 = vshrl.u32 %v598, 7
  %v600 = vsub.s32 0, %v599
  %v601 = vrot.slane %v492, %v600
  %603 = vbcast.lane.b32.xlu0 %v601, 256
  %v604 = vpop.permute.xlu0 %603
  %s606 = sor.u32 256, 8
  %607 = vbcast.lane.b32.xlu0 %v601, %s606
  %v608 = vpop.permute.xlu0 %607
  %s610 = sor.u32 256, 16
  %611 = vbcast.lane.b32.xlu0 %v601, %s610
  %v612 = vpop.permute.xlu0 %611
  %s614 = sor.u32 256, 24
  %615 = vbcast.lane.b32.xlu0 %v601, %s614
  %v616 = vpop.permute.xlu0 %615
  %v617 = vlaneseq
  %v618 = vshrl.u32 %v617, 7
  %v619 = vsub.s32 1, %v618
  %v620 = vrot.slane %v492, %v619
  %622 = vbcast.lane.b32.xlu0 %v620, 256
  %v623 = vpop.permute.xlu0 %622
  %s625 = sor.u32 256, 8
  %626 = vbcast.lane.b32.xlu0 %v620, %s625
  %v627 = vpop.permute.xlu0 %626
  %s629 = sor.u32 256, 16
  %630 = vbcast.lane.b32.xlu0 %v620, %s629
  %v631 = vpop.permute.xlu0 %630
  %s633 = sor.u32 256, 24
  %634 = vbcast.lane.b32.xlu0 %v620, %s633
  %v635 = vpop.permute.xlu0 %634
  %v636 = vlaneseq
  %v637 = vshrl.u32 %v636, 7
  %v638 = vsub.s32 2, %v637
  %v639 = vrot.slane %v492, %v638
  %641 = vbcast.lane.b32.xlu0 %v639, 256
  %v642 = vpop.permute.xlu0 %641
  %s644 = sor.u32 256, 8
  %645 = vbcast.lane.b32.xlu0 %v639, %s644
  %v646 = vpop.permute.xlu0 %645
  %s648 = sor.u32 256, 16
  %649 = vbcast.lane.b32.xlu0 %v639, %s648
  %v650 = vpop.permute.xlu0 %649
  %s652 = sor.u32 256, 24
  %653 = vbcast.lane.b32.xlu0 %v639, %s652
  %v654 = vpop.permute.xlu0 %653
  %v655 = vmul.f32 %v604, %v574
  %v656 = vmul.f32 %v604, %v575
  %v657 = vmul.f32 %v608, %v576
  %v658 = vmul.f32 %v608, %v577
  %v659 = vmul.f32 %v612, %v578
  %v660 = vmul.f32 %v612, %v579
  %v661 = vmul.f32 %v616, %v580
  %v662 = vmul.f32 %v616, %v581
  %v663 = vmul.f32 %v623, %v582
  %v664 = vmul.f32 %v623, %v583
  %v665 = vmul.f32 %v627, %v584
  %v666 = vmul.f32 %v627, %v585
  %v667 = vmul.f32 %v631, %v586
  %v668 = vmul.f32 %v631, %v587
  %v669 = vmul.f32 %v635, %v588
  %v670 = vmul.f32 %v635, %v589
  %v671 = vmul.f32 %v642, %v590
  %v672 = vmul.f32 %v642, %v591
  %v673 = vmul.f32 %v646, %v592
  %v674 = vmul.f32 %v646, %v593
  %v675 = vmul.f32 %v650, %v594
  %v676 = vmul.f32 %v650, %v595
  %v677 = vmul.f32 %v654, %v596
  %v678 = vmul.f32 %v654, %v597
  %v679 = vadd.f32 %v655, %v657
  %v680 = vadd.f32 %v679, %v659
  %v681 = vadd.f32 %v680, %v661
  %v682 = vrot.slane %v681, 4
  %v683 = vadd.f32 %v681, %v682
  %v684 = vrot.slane %v683, 2
  %v685 = vadd.f32 %v683, %v684
  %v686 = vrot.slane %v685, 1
  %v687 = vadd.f32 %v685, %v686
  %v688 = vadd.f32 %v656, %v658
  %v689 = vadd.f32 %v688, %v660
  %v690 = vadd.f32 %v689, %v662
  %v691 = vrot.slane %v690, 4
  %v692 = vadd.f32 %v690, %v691
  %v693 = vrot.slane %v692, 2
  %v694 = vadd.f32 %v692, %v693
  %v695 = vrot.slane %v694, 1
  %v696 = vadd.f32 %v694, %v695
  %v697 = vadd.f32 %v663, %v665
  %v698 = vadd.f32 %v697, %v667
  %v699 = vadd.f32 %v698, %v669
  %v700 = vrot.slane %v699, 4
  %v701 = vadd.f32 %v699, %v700
  %v702 = vrot.slane %v701, 2
  %v703 = vadd.f32 %v701, %v702
  %v704 = vrot.slane %v703, 1
  %v705 = vadd.f32 %v703, %v704
  %v706 = vadd.f32 %v664, %v666
  %v707 = vadd.f32 %v706, %v668
  %v708 = vadd.f32 %v707, %v670
  %v709 = vrot.slane %v708, 4
  %v710 = vadd.f32 %v708, %v709
  %v711 = vrot.slane %v710, 2
  %v712 = vadd.f32 %v710, %v711
  %v713 = vrot.slane %v712, 1
  %v714 = vadd.f32 %v712, %v713
  %v715 = vadd.f32 %v671, %v673
  %v716 = vadd.f32 %v715, %v675
  %v717 = vadd.f32 %v716, %v677
  %v718 = vrot.slane %v717, 4
  %v719 = vadd.f32 %v717, %v718
  %v720 = vrot.slane %v719, 2
  %v721 = vadd.f32 %v719, %v720
  %v722 = vrot.slane %v721, 1
  %v723 = vadd.f32 %v721, %v722
  %v724 = vadd.f32 %v672, %v674
  %v725 = vadd.f32 %v724, %v676
  %v726 = vadd.f32 %v725, %v678
  %v727 = vrot.slane %v726, 4
  %v728 = vadd.f32 %v726, %v727
  %v729 = vrot.slane %v728, 2
  %v730 = vadd.f32 %v728, %v729
  %v731 = vrot.slane %v730, 1
  %v732 = vadd.f32 %v730, %v731
  %v733 = vmax.f32 %v687, %v723
  %v734 = vmax.f32 %v733, %v705
  %v735 = vmax.f32 %v696, %v732
  %v736 = vmax.f32 %v735, %v714
  %v737 = vsub.f32 %v687, %v734
  %v738 = vsub.f32 %v696, %v736
  %v739 = vsub.f32 %v705, %v734
  %v740 = vsub.f32 %v714, %v736
  %v741 = vsub.f32 %v723, %v734
  %v742 = vsub.f32 %v732, %v736
  %v743 = vmul.f32 %v737, 1.442695
  %v744 = vpow.pop %v743
  %v745 = vmul.f32 %v738, 1.442695
  %v746 = vpow.pop %v745
  %v747 = vmul.f32 %v739, 1.442695
  %v748 = vpow.pop %v747
  %v749 = vmul.f32 %v740, 1.442695
  %v750 = vpow.pop %v749
  %v751 = vmul.f32 %v741, 1.442695
  %v752 = vpow.pop %v751
  %v753 = vmul.f32 %v742, 1.442695
  %v754 = vpow.pop %v753
  %v761 = vrot.slane %v748, 7
  %vm762 = vcmask 1041409
  %v763 = vsel %vm762, %v761, %v744
  %v764 = vrot.slane %v752, 6
  %vm765 = vcmask 1042434
  %v766 = vsel %vm765, %v764, %v763
  %v767 = vrot.slane %v750, 7
  %v768 = vsel %vm762, %v767, %v746
  %v769 = vrot.slane %v754, 6
  %v770 = vsel %vm765, %v769, %v768
  %vm773 = vcmask 1042432
  %v774 = vsel %vm773, %v766, 0.0
  %v775 = vrot.slane %v774, 4
  %v776 = vadd.f32 %v774, %v775
  %v777 = vrot.slane %v776, 2
  %v778 = vadd.f32 %v776, %v777
  %v779 = vrot.slane %v778, 1
  %v780 = vadd.f32 %v778, %v779
  %v781 = vsel %vm773, %v770, 0.0
  %v782 = vrot.slane %v781, 4
  %v783 = vadd.f32 %v781, %v782
  %v784 = vrot.slane %v783, 2
  %v785 = vadd.f32 %v783, %v784
  %v786 = vrot.slane %v785, 1
  %v787 = vadd.f32 %v785, %v786
  %v788 = vrcp.pop %v780
  %v789 = vrcp.pop %v787
  %v790 = vlaneseq
  %v791 = vshrl.u32 %v790, 7
  %v792 = vsub.s32 0, %v791
  %v793 = vrot.slane %v788, %v792
  %v794 = vlaneseq
  %v795 = vshrl.u32 %v794, 7
  %v796 = vsub.s32 0, %v795
  %v797 = vrot.slane %v789, %v796
  %v798 = vmul.f32 %v744, %v793
  %v799 = vmul.f32 %v746, %v797
  %v800 = vmul.f32 %v748, %v793
  %v801 = vmul.f32 %v750, %v797
  %v802 = vmul.f32 %v752, %v793
  %v803 = vmul.f32 %v754, %v797
  %v804 = vlaneseq
  %v805 = vshrl.u32 %v804, 7
  %v806 = vsub.s32 0, %v805
  %v807 = vrot.slane %v798, %v806
  %v808 = vlaneseq
  %v809 = vshrl.u32 %v808, 7
  %v810 = vsub.s32 0, %v809
  %v811 = vrot.slane %v799, %v810
  %v812 = vlaneseq
  %v813 = vshrl.u32 %v812, 7
  %v814 = vsub.s32 0, %v813
  %v815 = vrot.slane %v800, %v814
  %v816 = vlaneseq
  %v817 = vshrl.u32 %v816, 7
  %v818 = vsub.s32 0, %v817
  %v819 = vrot.slane %v801, %v818
  %v820 = vlaneseq
  %v821 = vshrl.u32 %v820, 7
  %v822 = vsub.s32 0, %v821
  %v823 = vrot.slane %v802, %v822
  %v824 = vlaneseq
  %v825 = vshrl.u32 %v824, 7
  %v826 = vsub.s32 0, %v825
  %v827 = vrot.slane %v803, %v826
  %v828 = vmul.f32 %v807, %v129
  %v829 = vmul.f32 %v811, %v161
  %v830 = vmul.f32 %v807, %v130
  %v831 = vmul.f32 %v811, %v162
  %v832 = vmul.f32 %v807, %v131
  %v833 = vmul.f32 %v811, %v163
  %v834 = vmul.f32 %v807, %v132
  %v835 = vmul.f32 %v811, %v164
  %v836 = vmul.f32 %v815, %v193
  %v837 = vmul.f32 %v819, %v225
  %v838 = vmul.f32 %v815, %v194
  %v839 = vmul.f32 %v819, %v226
  %v840 = vmul.f32 %v815, %v195
  %v841 = vmul.f32 %v819, %v227
  %v842 = vmul.f32 %v815, %v196
  %v843 = vmul.f32 %v819, %v228
  %v844 = vmul.f32 %v823, %v257
  %v845 = vmul.f32 %v827, %v289
  %v846 = vmul.f32 %v823, %v258
  %v847 = vmul.f32 %v827, %v290
  %v848 = vmul.f32 %v823, %v259
  %v849 = vmul.f32 %v827, %v291
  %v850 = vmul.f32 %v823, %v260
  %v851 = vmul.f32 %v827, %v292
  %v852 = vadd.f32 %v828, %v836
  %v853 = vadd.f32 %v852, %v844
  %v854 = vadd.f32 %v829, %v837
  %v855 = vadd.f32 %v854, %v845
  %v856 = vadd.f32 %v830, %v838
  %v857 = vadd.f32 %v856, %v846
  %v858 = vadd.f32 %v831, %v839
  %v859 = vadd.f32 %v858, %v847
  %v860 = vadd.f32 %v832, %v840
  %v861 = vadd.f32 %v860, %v848
  %v862 = vadd.f32 %v833, %v841
  %v863 = vadd.f32 %v862, %v849
  %v864 = vadd.f32 %v834, %v842
  %v865 = vadd.f32 %v864, %v850
  %v866 = vadd.f32 %v835, %v843
  %v867 = vadd.f32 %v866, %v851
  %868 = vxpose.xlu0.b32.start [1/16] %v853, 128
  %869 = vxpose.xlu0.b32.cont [2/16] %v857, 128
  %870 = vxpose.xlu0.b32.cont [3/16] %v861, 128
  %871 = vxpose.xlu0.b32.cont [4/16] %v865, 128
  %872 = vxpose.xlu0.b32.cont [5/16] 0.0, 128
  %873 = vxpose.xlu0.b32.cont [6/16] 0.0, 128
  %874 = vxpose.xlu0.b32.cont [7/16] 0.0, 128
  %875 = vxpose.xlu0.b32.cont [8/16] 0.0, 128
  %876 = vxpose.xlu0.b32.cont [9/16] 0.0, 128
  %877 = vxpose.xlu0.b32.cont [10/16] 0.0, 128
  %878 = vxpose.xlu0.b32.cont [11/16] 0.0, 128
  %879 = vxpose.xlu0.b32.cont [12/16] 0.0, 128
  %880 = vxpose.xlu0.b32.cont [13/16] 0.0, 128
  %881 = vxpose.xlu0.b32.cont [14/16] 0.0, 128
  %882 = vxpose.xlu0.b32.cont [15/16] 0.0, 128
  %883 = vxpose.xlu0.b32.end [16/16] 0.0, 128
  %v884 = vpop.trf.xlu0
  %v885 = vpop.trf.xlu0
  %v886 = vpop.trf.xlu0
  %v887 = vpop.trf.xlu0
  %v888 = vpop.trf.xlu0
  %v889 = vpop.trf.xlu0
  %v890 = vpop.trf.xlu0
  %v891 = vpop.trf.xlu0
  %v892 = vpop.trf.xlu0
  %v893 = vpop.trf.xlu0
  %v894 = vpop.trf.xlu0
  %v895 = vpop.trf.xlu0
  %v896 = vpop.trf.xlu0
  %v897 = vpop.trf.xlu0
  %v898 = vpop.trf.xlu0
  %v899 = vpop.trf.xlu0
  %900 = vxpose.xlu0.b32.start [1/16] %v855, 128
  %901 = vxpose.xlu0.b32.cont [2/16] %v859, 128
  %902 = vxpose.xlu0.b32.cont [3/16] %v863, 128
  %903 = vxpose.xlu0.b32.cont [4/16] %v867, 128
  %904 = vxpose.xlu0.b32.cont [5/16] 0.0, 128
  %905 = vxpose.xlu0.b32.cont [6/16] 0.0, 128
  %906 = vxpose.xlu0.b32.cont [7/16] 0.0, 128
  %907 = vxpose.xlu0.b32.cont [8/16] 0.0, 128
  %908 = vxpose.xlu0.b32.cont [9/16] 0.0, 128
  %909 = vxpose.xlu0.b32.cont [10/16] 0.0, 128
  %910 = vxpose.xlu0.b32.cont [11/16] 0.0, 128
  %911 = vxpose.xlu0.b32.cont [12/16] 0.0, 128
  %912 = vxpose.xlu0.b32.cont [13/16] 0.0, 128
  %913 = vxpose.xlu0.b32.cont [14/16] 0.0, 128
  %914 = vxpose.xlu0.b32.cont [15/16] 0.0, 128
  %915 = vxpose.xlu0.b32.end [16/16] 0.0, 128
  %v916 = vpop.trf.xlu0
  %v917 = vpop.trf.xlu0
  %v918 = vpop.trf.xlu0
  %v919 = vpop.trf.xlu0
  %v920 = vpop.trf.xlu0
  %v921 = vpop.trf.xlu0
  %v922 = vpop.trf.xlu0
  %v923 = vpop.trf.xlu0
  %v924 = vpop.trf.xlu0
  %v925 = vpop.trf.xlu0
  %v926 = vpop.trf.xlu0
  %v927 = vpop.trf.xlu0
  %v928 = vpop.trf.xlu0
  %v929 = vpop.trf.xlu0
  %v930 = vpop.trf.xlu0
  %v931 = vpop.trf.xlu0
  %vm932 = vcmask 261120
  %933 = vst.msk [vmem:[%s4] sm:$0xff] %vm932, %v884
  %934 = vst.msk [vmem:[%s4 + $0x8] sm:$0xff] %vm932, %v885
  %935 = vst.msk [vmem:[%s4 + $0x10] sm:$0xff] %vm932, %v886
  %936 = vst.msk [vmem:[%s4 + $0x18] sm:$0xff] %vm932, %v887
  %937 = vst.msk [vmem:[%s4 + $0x20] sm:$0xff] %vm932, %v888
  %938 = vst.msk [vmem:[%s4 + $0x28] sm:$0xff] %vm932, %v889
  %939 = vst.msk [vmem:[%s4 + $0x30] sm:$0xff] %vm932, %v890
  %940 = vst.msk [vmem:[%s4 + $0x38] sm:$0xff] %vm932, %v891
  %941 = vst.msk [vmem:[%s4 + $0x40] sm:$0xff] %vm932, %v892
  %942 = vst.msk [vmem:[%s4 + $0x48] sm:$0xff] %vm932, %v893
  %943 = vst.msk [vmem:[%s4 + $0x50] sm:$0xff] %vm932, %v894
  %944 = vst.msk [vmem:[%s4 + $0x58] sm:$0xff] %vm932, %v895
  %945 = vst.msk [vmem:[%s4 + $0x60] sm:$0xff] %vm932, %v896
  %946 = vst.msk [vmem:[%s4 + $0x68] sm:$0xff] %vm932, %v897
  %947 = vst.msk [vmem:[%s4 + $0x70] sm:$0xff] %vm932, %v898
  %948 = vst.msk [vmem:[%s4 + $0x78] sm:$0xff] %vm932, %v899
  %949 = vst.msk [vmem:[%s4 + $0x80] sm:$0xff] %vm932, %v916
  %950 = vst.msk [vmem:[%s4 + $0x88] sm:$0xff] %vm932, %v917
  %951 = vst.msk [vmem:[%s4 + $0x90] sm:$0xff] %vm932, %v918
  %952 = vst.msk [vmem:[%s4 + $0x98] sm:$0xff] %vm932, %v919
  %953 = vst.msk [vmem:[%s4 + $0xa0] sm:$0xff] %vm932, %v920
  %954 = vst.msk [vmem:[%s4 + $0xa8] sm:$0xff] %vm932, %v921
  %955 = vst.msk [vmem:[%s4 + $0xb0] sm:$0xff] %vm932, %v922
  %956 = vst.msk [vmem:[%s4 + $0xb8] sm:$0xff] %vm932, %v923
  %957 = vst.msk [vmem:[%s4 + $0xc0] sm:$0xff] %vm932, %v924
  %958 = vst.msk [vmem:[%s4 + $0xc8] sm:$0xff] %vm932, %v925
  %959 = vst.msk [vmem:[%s4 + $0xd0] sm:$0xff] %vm932, %v926
  %960 = vst.msk [vmem:[%s4 + $0xd8] sm:$0xff] %vm932, %v927
  %961 = vst.msk [vmem:[%s4 + $0xe0] sm:$0xff] %vm932, %v928
  %962 = vst.msk [vmem:[%s4 + $0xe8] sm:$0xff] %vm932, %v929
  %963 = vst.msk [vmem:[%s4 + $0xf0] sm:$0xff] %vm932, %v930
  %964 = vst.msk [vmem:[%s4 + $0xf8] sm:$0xff] %vm932, %v931
  // Predicated region
  $region18: #{tpu_custom_call.1} parent=0 // pred_check
    _
  $region19: #{tpu_custom_call.1} parent=0 // pred_check_branch
    %966 = sbr.rel (0) target = $region21
  $region20: #{tpu_custom_call.1} parent=0 // pred_region
    _
  $region21: #{tpu_custom_call.1} parent=0 // pred_fallthru
    _
  // Predicated region
  $region22: #{tpu_custom_call.1} parent=0 // pred_check
    _
  $region23: #{tpu_custom_call.1} parent=0 // pred_check_branch
    %968 = sbr.rel (0) target = $region25
  $region24: #{tpu_custom_call.1} parent=0 // pred_region
    _
  $region25: #{tpu_custom_call.1} parent=0 // pred_fallthru
    _

</llo_original>
